<compile_context>
chip_gen: v7x
topology: tpu7x:2x2x1
jax: 0.10.0
libtpu: 0.0.40
codegen_flags: <defaults>
</compile_context>

<pallas_src>
import jax
import jax.numpy as jnp
from jax.experimental import pallas as pl
from jax.experimental.pallas import tpu as pltpu

F_IN = 100    # nn.Linear(100, 100) feature width from the PyTorch module
F_PAD = 128   # lane-aligned padded width


def _round_up(x, m):
    return (x + m - 1) // m * m


def unit_module_kernel(x_ref, w_ref, b_ref, o_ref):
    """Fused l1 -> ReLU -> Linear -> ReLU -> l2 on one (TB, 128) batch tile."""
    x = x_ref[...]            # (TB, F_PAD)
    w = w_ref[...]            # (3, F_PAD, F_PAD), already laid out (in, out)
    b = b_ref[...]            # (3, 1, F_PAD)

    # l1
    h = jnp.dot(x, w[0], preferred_element_type=jnp.float32) + b[0]
    # seq: ReLU, Linear, ReLU
    h = jnp.maximum(h, 0.0)
    h = jnp.dot(h, w[1], preferred_element_type=jnp.float32) + b[1]
    h = jnp.maximum(h, 0.0)
    # l2
    out = jnp.dot(h, w[2], preferred_element_type=jnp.float32) + b[2]

    o_ref[...] = out.astype(o_ref.dtype)


def pack_params(params, f_in=F_IN, f_pad=F_PAD):
    """One-time prep: PyTorch-style (out, in) weights -> padded (in, out), packed.

    Returns (w_packed, b_packed): (3, f_pad, f_pad) and (3, 1, f_pad).
    Padded rows/cols/lanes are exactly zero, so they contribute nothing to the
    first f_in output lanes (ReLU(0) = 0 keeps them zero through the stack).
    """
    ws, bs = [], []
    for name in ("l1", "seq1", "l2"):
        w, b = params[name]                       # w: (out, in), b: (out,)
        wt = jnp.zeros((f_pad, f_pad), jnp.float32).at[:f_in, :f_in].set(w.T)
        bt = jnp.zeros((1, f_pad), jnp.float32).at[0, :f_in].set(b)
        ws.append(wt)
        bs.append(bt)
    return jnp.stack(ws), jnp.stack(bs)


def unit_module_forward(x, w_packed, b_packed, *, block_b=None):
    """x: (B, 100) f32. w_packed/b_packed from pack_params(). Returns (B, 100)."""
    B, F = x.shape
    f_pad = w_packed.shape[-1]

    if block_b is None:
        if B <= 8:
            block_b = 8
        else:
            # Aim for >= 2 batch tiles (feeds both v7x TCs / the pipeline),
            # multiple of 8 sublanes, capped at 128 rows per tile.
            block_b = min(128, _round_up(-(-B // 2), 8))
    b_pad = _round_up(B, block_b)

    # Single pad op per call (batch + feature); params are already padded.
    xp = jnp.zeros((b_pad, f_pad), jnp.float32).at[:B, :F].set(x)

    out_padded = pl.pallas_call(
        unit_module_kernel,
        out_shape=jax.ShapeDtypeStruct((b_pad, f_pad), jnp.float32),
        grid_spec=pltpu.PrefetchScalarGridSpec(
            num_scalar_prefetch=0,
            grid=(b_pad // block_b,),
            in_specs=[
                pl.BlockSpec((block_b, f_pad), lambda i: (i, 0)),       # x tile
                pl.BlockSpec((3, f_pad, f_pad), lambda i: (0, 0, 0)),   # weights, resident
                pl.BlockSpec((3, 1, f_pad), lambda i: (0, 0, 0)),       # biases, resident
            ],
            out_specs=pl.BlockSpec((block_b, f_pad), lambda i: (i, 0)),
        ),
        compiler_params=pltpu.CompilerParams(
            dimension_semantics=("parallel",)),
    )(xp, w_packed, b_packed)

    return out_padded[:B, :F]


def init_params(key, dim=F_IN):
    """Deterministic PyTorch-Linear-like init: U(-1/sqrt(in), 1/sqrt(in))."""
    bound = 1.0 / jnp.sqrt(dim)
    keys = jax.random.split(key, 6)

    def lin(kw, kb):
        w = jax.random.uniform(kw, (dim, dim), jnp.float32, -bound, bound)  # (out, in)
        b = jax.random.uniform(kb, (dim,), jnp.float32, -bound, bound)
        return w, b

    return {
        "l1": lin(keys[0], keys[1]),
        "seq1": lin(keys[2], keys[3]),
        "l2": lin(keys[4], keys[5]),
    }


def reference_forward(x, params):
    def linear(h, wb):
        w, b = wb
        return h @ w.T + b

    h = linear(x, params["l1"])
    h = jnp.maximum(h, 0.0)
    h = linear(h, params["seq1"])
    h = jnp.maximum(h, 0.0)
    return linear(h, params["l2"])


if __name__ == "__main__":
    key = jax.random.PRNGKey(0)
    kx, kp = jax.random.split(key)

    B, F = 64, F_IN
    x = jax.random.normal(kx, (B, F), jnp.float32)
    params = init_params(kp, F)

    # One-time packing (transpose + pad + stack) — not part of the per-call path.
    w_packed, b_packed = pack_params(params)
    w_packed = jax.block_until_ready(w_packed)
    b_packed = jax.block_until_ready(b_packed)

    fwd = jax.jit(unit_module_forward)
    out = fwd(x, w_packed, b_packed)
    out = jax.block_until_ready(out)

    ref = reference_forward(x, params)
    assert out.shape == (B, F)
    assert jnp.allclose(out, ref, atol=1e-4, rtol=1e-4), "mismatch vs pure-JAX reference"

    print("KERNEL_OK")
</pallas_src>

<mosaic_0001>
module attributes {stable_mosaic.version = 11 : i64} {
  func.func @unit_module_kernel(%arg0: i32, %arg1: memref<32x128xf32, #tpu.memory_space<vmem>>, %arg2: memref<3x128x128xf32, #tpu.memory_space<vmem>>, %arg3: memref<3x1x128xf32, #tpu.memory_space<vmem>>, %arg4: memref<32x128xf32, #tpu.memory_space<vmem>>) attributes {dimension_semantics = [#tpu.dimension_semantics<parallel>], iteration_bounds = array<i64: 2>, scalar_prefetch = 0 : i64, scratch_operands = 0 : i64, tpu.core_type = #tpu.core_type<tc>, window_params = [{transform_indices = @transform_0, window_bounds = array<i64: 32, 128>}, {pipeline_mode = #tpu.pipeline_mode<synchronous>, transform_indices = @transform_1, window_bounds = array<i64: 3, 128, 128>}, {pipeline_mode = #tpu.pipeline_mode<synchronous>, transform_indices = @transform_2, window_bounds = array<i64: 3, 1, 128>}, {transform_indices = @transform_3, window_bounds = array<i64: 32, 128>}]} {
    %c0 = arith.constant 0 : index
    %c0_0 = arith.constant 0 : index
    %0 = vector.load %arg1[%c0, %c0_0] : memref<32x128xf32, #tpu.memory_space<vmem>>, vector<32x128xf32>
    %c0_1 = arith.constant 0 : index
    %c0_2 = arith.constant 0 : index
    %c0_3 = arith.constant 0 : index
    %1 = vector.load %arg2[%c0_1, %c0_2, %c0_3] : memref<3x128x128xf32, #tpu.memory_space<vmem>>, vector<3x128x128xf32>
    %c0_4 = arith.constant 0 : index
    %c0_5 = arith.constant 0 : index
    %c0_6 = arith.constant 0 : index
    %2 = vector.load %arg3[%c0_4, %c0_5, %c0_6] : memref<3x1x128xf32, #tpu.memory_space<vmem>>, vector<3x1x128xf32>
    %3 = vector.extract_strided_slice %1 {offsets = [0, 0, 0], sizes = [1, 128, 128], strides = [1, 1, 1]} : vector<3x128x128xf32> to vector<1x128x128xf32>
    %4 = vector.shape_cast %3 : vector<1x128x128xf32> to vector<128x128xf32>
    %cst = arith.constant dense<0.000000e+00> : vector<32x128xf32>
    %5 = tpu.matmul %0, %4, %cst {dimension_numbers = #tpu.dot_dimension_numbers<[1], [0], [0], [1], [0, 0, 1, 1], [], []>} : vector<32x128xf32>, vector<128x128xf32>, vector<32x128xf32> -> vector<32x128xf32>
    %6 = vector.extract_strided_slice %2 {offsets = [0, 0, 0], sizes = [1, 1, 128], strides = [1, 1, 1]} : vector<3x1x128xf32> to vector<1x1x128xf32>
    %7 = vector.shape_cast %6 : vector<1x1x128xf32> to vector<1x128xf32>
    %8 = vector.broadcast %7 : vector<1x128xf32> to vector<32x128xf32>
    %9 = arith.addf %5, %8 : vector<32x128xf32>
    %cst_7 = arith.constant 0.000000e+00 : f32
    %10 = vector.broadcast %cst_7 : f32 to vector<32x128xf32>
    %11 = arith.maximumf %9, %10 : vector<32x128xf32>
    %12 = vector.extract_strided_slice %1 {offsets = [1, 0, 0], sizes = [1, 128, 128], strides = [1, 1, 1]} : vector<3x128x128xf32> to vector<1x128x128xf32>
    %13 = vector.shape_cast %12 : vector<1x128x128xf32> to vector<128x128xf32>
    %cst_8 = arith.constant dense<0.000000e+00> : vector<32x128xf32>
    %14 = tpu.matmul %11, %13, %cst_8 {dimension_numbers = #tpu.dot_dimension_numbers<[1], [0], [0], [1], [0, 0, 1, 1], [], []>} : vector<32x128xf32>, vector<128x128xf32>, vector<32x128xf32> -> vector<32x128xf32>
    %15 = vector.extract_strided_slice %2 {offsets = [1, 0, 0], sizes = [1, 1, 128], strides = [1, 1, 1]} : vector<3x1x128xf32> to vector<1x1x128xf32>
    %16 = vector.shape_cast %15 : vector<1x1x128xf32> to vector<1x128xf32>
    %17 = vector.broadcast %16 : vector<1x128xf32> to vector<32x128xf32>
    %18 = arith.addf %14, %17 : vector<32x128xf32>
    %cst_9 = arith.constant 0.000000e+00 : f32
    %19 = vector.broadcast %cst_9 : f32 to vector<32x128xf32>
    %20 = arith.maximumf %18, %19 : vector<32x128xf32>
    %21 = vector.extract_strided_slice %1 {offsets = [2, 0, 0], sizes = [1, 128, 128], strides = [1, 1, 1]} : vector<3x128x128xf32> to vector<1x128x128xf32>
    %22 = vector.shape_cast %21 : vector<1x128x128xf32> to vector<128x128xf32>
    %cst_10 = arith.constant dense<0.000000e+00> : vector<32x128xf32>
    %23 = tpu.matmul %20, %22, %cst_10 {dimension_numbers = #tpu.dot_dimension_numbers<[1], [0], [0], [1], [0, 0, 1, 1], [], []>} : vector<32x128xf32>, vector<128x128xf32>, vector<32x128xf32> -> vector<32x128xf32>
    %24 = vector.extract_strided_slice %2 {offsets = [2, 0, 0], sizes = [1, 1, 128], strides = [1, 1, 1]} : vector<3x1x128xf32> to vector<1x1x128xf32>
    %25 = vector.shape_cast %24 : vector<1x1x128xf32> to vector<1x128xf32>
    %26 = vector.broadcast %25 : vector<1x128xf32> to vector<32x128xf32>
    %27 = arith.addf %23, %26 : vector<32x128xf32>
    %c0_11 = arith.constant 0 : index
    %c0_12 = arith.constant 0 : index
    %28 = vector.load %arg4[%c0_11, %c0_12] : memref<32x128xf32, #tpu.memory_space<vmem>>, vector<32x128xf32>
    tpu.vector_store %arg4[%c0_11, %c0_12], %27 {strides = array<i32>} : memref<32x128xf32, #tpu.memory_space<vmem>>, vector<32x128xf32>,
    return
  }
  func.func @transform_0(%arg0: i32) -> (i32, i32) {
    %c0_i32 = arith.constant 0 : i32
    %c0_i32_0 = arith.constant 0 : i32
    return %arg0, %c0_i32 : i32, i32
  }
  func.func @transform_1(%arg0: i32) -> (i32, i32, i32) {
    %c0_i32 = arith.constant 0 : i32
    %c0_i32_0 = arith.constant 0 : i32
    %c0_i32_1 = arith.constant 0 : i32
    %c0_i32_2 = arith.constant 0 : i32
    return %c0_i32, %c0_i32_0, %c0_i32_1 : i32, i32, i32
  }
  func.func @transform_2(%arg0: i32) -> (i32, i32, i32) {
    %c0_i32 = arith.constant 0 : i32
    %c0_i32_0 = arith.constant 0 : i32
    %c0_i32_1 = arith.constant 0 : i32
    %c0_i32_2 = arith.constant 0 : i32
    return %c0_i32, %c0_i32_0, %c0_i32_1 : i32, i32, i32
  }
  func.func @transform_3(%arg0: i32) -> (i32, i32) {
    %c0_i32 = arith.constant 0 : i32
    %c0_i32_0 = arith.constant 0 : i32
    return %arg0, %c0_i32 : i32, i32
  }
}

</mosaic_0001>

<llo_original>
// kernel: unit_module_forward.1
$region0: #{unit_module_forward.1}
  #allocation0 [shape = 'u32[]', space=smem, size = 0x4, offset = 0x4, fixed_abs, tag = 'smem constant byte address 0x4 - core index']
  #allocation1 [shape = 'u32[144,128]{1,0:T(1,128)}', space=vmem, size = 0x12000, scoped, tag = 'internal scratch']
  %s0 = inlined_call_operand.vmem [shape: f32[64,128], index: 0, kind: input, shape index: {}]
  %s1 = inlined_call_operand.hbm [shape: f32[3,128,128], index: 1, kind: input, shape index: {}]
  %s2 = inlined_call_operand.vmem [shape: f32[3,1,128], index: 2, kind: input, shape index: {}]
  %s3 = inlined_call_operand.hbm [shape: f32[64,128], index: 3, kind: output, shape index: {}]
  %s4 = sld [smem:[#allocation0]]
  $region49: #{unit_module_forward.1} parent=0
    _
  %s6 = ssub.s32 1, %s4
  %s7 = scalar_select 0, %s6, %s4
  $region1: #{unit_module_forward.1} parent=0
    #allocation2 [shape = 'u8[196608]{0}', space=vmem, size = 0x30000, scoped, tag = 'input window, operand 1, single buffered']
    #allocation3 [shape = 's32[2]{0}', space=sflag, size = 0x8, scoped, tag = 'scoped memory for unit_module_forward.1']
    #allocation4 [shape = 's32[2]{0}', space=sflag, size = 0x8, scoped, tag = 'scoped memory for unit_module_forward.1']
    #allocation5 [shape = 'u8[32768]{0}', space=vmem, size = 0x8000, scoped, tag = 'output window, operand 0']
    %8 = vsyncpa [#allocation3], 0
    %9 = vsyncpa [#allocation4], 0
    %s10 = scalar_lea.sflag [#allocation4], 1
    %11 = vsyncpa %s10, 0
    loop: start=0, step=1, limit=4
    $region2: #{unit_module_forward.1} parent=1 // loop_pre_header
      _
    $region3: #{unit_module_forward.1} parent=1 // loop_header
      %s13 = sphi 0, %s17
      %p14 = scmp.ge.s32.totalorder %s13, 4
      %s23 = sphi 0, %s25
      %s26 = sphi 0, %s23
      %s27 = sphi 0, %s26
      %s43 = sphi 0, %s27
      %s47 = sphi 0, %s47
      %s49 = sphi 0, %s47
      %s50 = sphi 0, %s49
      %s64 = sphi 0, %s50
      %s68 = sphi 0, %s68
      %s70 = sphi 0, %s68
      %s71 = sphi 0, %s70
      %s85 = sphi 0, %s71
      %s91 = sphi 0, %s93
      %s94 = sphi 0, %s91
      %s95 = sphi 0, %s94
      %s111 = sphi 0, %s95
    $region4: #{unit_module_forward.1} parent=1 // loop_header_branch
      %16 = sbr.rel (%p14) target = $region8
    $region5: #{unit_module_forward.1} parent=1 // loop_body
      %s18 = ssub.s32 %s13, 1
      %s19 = ssub.s32 %s13, 2
      %s20 = sadd.s32 %s13, 1
      %s21 = ssub.s32 %s13, %s20
      %p22 = scmp.eq.s32.totalorder %s21, 0
      %s24 = sadd.s32 %s23, 1
      %s25 = scalar_select %p22, %s23, %s24
      %p28 = pneg %p22
      %p29 = scmp.eq.s32.totalorder %s13, 1
      %p30 = por %p28, %p29
      %p31 = scmp.ne.s32.totalorder %s23, %s26
      %p32 = scmp.eq.s32.totalorder %s13, 0
      %p33 = por %p31, %p32
      %p34 = scmp.ne.s32.totalorder %s23, %s26
      %p35 = scmp.eq.s32.totalorder %s18, 1
      %p36 = por %p34, %p35
      %p37 = scmp.ne.s32.totalorder %s26, %s27
      %p38 = scmp.eq.s32.totalorder %s18, 0
      %p39 = por %p37, %p38
      %p40 = scmp.ne.s32.totalorder %s26, %s27
      %p41 = scmp.eq.s32.totalorder %s19, 1
      %p42 = por %p40, %p41
      %p44 = scmp.ne.s32.totalorder %s27, %s43
      %p45 = scmp.eq.s32.totalorder %s19, 0
      %p46 = por %p44, %p45
      %s48 = sadd.s32 %s47, 1
      %p51 = scmp.eq.s32.totalorder %s13, 1
      %p52 = scmp.ne.s32.totalorder %s47, %s49
      %p53 = scmp.eq.s32.totalorder %s13, 0
      %p54 = por %p52, %p53
      %p55 = scmp.ne.s32.totalorder %s47, %s49
      %p56 = scmp.eq.s32.totalorder %s18, 1
      %p57 = por %p55, %p56
      %p58 = scmp.ne.s32.totalorder %s49, %s50
      %p59 = scmp.eq.s32.totalorder %s18, 0
      %p60 = por %p58, %p59
      %p61 = scmp.ne.s32.totalorder %s49, %s50
      %p62 = scmp.eq.s32.totalorder %s19, 1
      %p63 = por %p61, %p62
      %p65 = scmp.ne.s32.totalorder %s50, %s64
      %p66 = scmp.eq.s32.totalorder %s19, 0
      %p67 = por %p65, %p66
      %s69 = sadd.s32 %s68, 1
      %p72 = scmp.eq.s32.totalorder %s13, 1
      %p73 = scmp.ne.s32.totalorder %s68, %s70
      %p74 = scmp.eq.s32.totalorder %s13, 0
      %p75 = por %p73, %p74
      %p76 = scmp.ne.s32.totalorder %s68, %s70
      %p77 = scmp.eq.s32.totalorder %s18, 1
      %p78 = por %p76, %p77
      %p79 = scmp.ne.s32.totalorder %s70, %s71
      %p80 = scmp.eq.s32.totalorder %s18, 0
      %p81 = por %p79, %p80
      %p82 = scmp.ne.s32.totalorder %s70, %s71
      %p83 = scmp.eq.s32.totalorder %s19, 1
      %p84 = por %p82, %p83
      %p86 = scmp.ne.s32.totalorder %s71, %s85
      %p87 = scmp.eq.s32.totalorder %s19, 0
      %p88 = por %p86, %p87
      %s89 = ssub.s32 %s13, %s20
      %p90 = scmp.eq.s32.totalorder %s89, 0
      %s92 = sadd.s32 %s91, 1
      %s93 = scalar_select %p90, %s91, %s92
      %p96 = pneg %p90
      %p97 = scmp.eq.s32.totalorder %s13, 1
      %p98 = por %p96, %p97
      %p99 = scmp.ne.s32.totalorder %s91, %s94
      %p100 = scmp.eq.s32.totalorder %s13, 0
      %p101 = por %p99, %p100
      %p102 = scmp.ne.s32.totalorder %s91, %s94
      %p103 = scmp.eq.s32.totalorder %s18, 1
      %p104 = por %p102, %p103
      %p105 = scmp.ne.s32.totalorder %s94, %s95
      %p106 = scmp.eq.s32.totalorder %s18, 0
      %p107 = por %p105, %p106
      %p108 = scmp.ne.s32.totalorder %s94, %s95
      %p109 = scmp.eq.s32.totalorder %s19, 1
      %p110 = por %p108, %p109
      %p112 = scmp.ne.s32.totalorder %s95, %s111
      %p113 = scmp.eq.s32.totalorder %s19, 0
      %p114 = por %p112, %p113
      %p115 = scmp.le.s32.totalorder 1, %s13
      %p116 = scmp.lt.s32.totalorder %s13, 3
      %p117 = pnand %p115, %p116
      %p118 = pneg %p117
      // Predicated region
      $region9: #{unit_module_forward.1} parent=5 // pred_check
        _
      $region10: #{unit_module_forward.1} parent=5 // pred_check_branch
        %120 = sbr.rel (%p117) target = $region12
      $region11: #{unit_module_forward.1} parent=5 // pred_region
        %s121 = ssub.s32 %s13, 1
        // Predicated region
        $region13: #{unit_module_forward.1} parent=11 // pred_check
          %p122 = pneg %p60
        $region14: #{unit_module_forward.1} parent=11 // pred_check_branch
          %124 = sbr.rel (%p122) target = $region16
        $region15: #{unit_module_forward.1} parent=11 // pred_region
          %s126 = ssub.s32 6144, 6144
          %127 = vsyncadd [#allocation3], %s126
          %s128 = sshll.u32 [#allocation2], 4
          %s129 = int_to_ptr.vmem [resolvable:$true] %s128
          %134 = dma.hbm_to_vmem [thread:$0]  %s1, 6144, %s129, [#allocation3], 128, 128, 8
        $region16: #{unit_module_forward.1} parent=11 // pred_fallthru
          _
        // Predicated region
        $region17: #{unit_module_forward.1} parent=11 // pred_check
          %p135 = pneg %p81
        $region18: #{unit_module_forward.1} parent=11 // pred_check_branch
          %137 = sbr.rel (%p135) target = $region20
        $region19: #{unit_module_forward.1} parent=11 // pred_region
          _
        $region20: #{unit_module_forward.1} parent=11 // pred_fallthru
          _
      $region12: #{unit_module_forward.1} parent=5 // pred_fallthru
        _
      %p138 = scmp.lt.s32.totalorder %s13, 2
      // Predicated region
      $region21: #{unit_module_forward.1} parent=5 // pred_check
        %p139 = pneg %p138
      $region22: #{unit_module_forward.1} parent=5 // pred_check_branch
        %141 = sbr.rel (%p139) target = $region24
      $region23: #{unit_module_forward.1} parent=5 // pred_region
        // Predicated region
        $region25: #{unit_module_forward.1} parent=23 // pred_check
          %p142 = pneg %p33
        $region26: #{unit_module_forward.1} parent=23 // pred_check_branch
          %144 = sbr.rel (%p142) target = $region28
        $region27: #{unit_module_forward.1} parent=23 // pred_region
          %s145 = smul.u32 4, %s13
          %p146 = scmp.lt.s32.totalorder %s145, 7
          %s147 = scalar_select %p146, %s145, 7
          %s148 = smul.addr %s147, 8
          %s149 = scalar_lea.vmem %s0, %s148
          %s150 = smul.u32 4, %s13
        $region28: #{unit_module_forward.1} parent=23 // pred_fallthru
          _
      $region24: #{unit_module_forward.1} parent=5 // pred_fallthru
        _
      %p151 = scmp.le.s32.totalorder 1, %s13
      %p152 = scmp.lt.s32.totalorder %s13, 3
      %p153 = pnand %p151, %p152
      %p154 = pneg %p153
      // Predicated region
      $region29: #{unit_module_forward.1} parent=5 // pred_check
        _
      $region30: #{unit_module_forward.1} parent=5 // pred_check_branch
        %156 = sbr.rel (%p153) target = $region32
      $region31: #{unit_module_forward.1} parent=5 // pred_region
        %s157 = ssub.s32 %s13, 1
        // Predicated region
        $region33: #{unit_module_forward.1} parent=31 // pred_check
          %p158 = pneg %p60
        $region34: #{unit_module_forward.1} parent=31 // pred_check_branch
          %160 = sbr.rel (%p158) target = $region36
        $region35: #{unit_module_forward.1} parent=31 // pred_region
          %161 = dma.done [#allocation3], 6144
        $region36: #{unit_module_forward.1} parent=31 // pred_fallthru
          _
        %s162 = smul.u32 4, %s18
        %p163 = scmp.lt.s32.totalorder %s162, 7
        %s164 = scalar_select %p163, %s162, 7
        %s165 = smul.addr %s164, 8
        %s166 = scalar_lea.vmem %s0, %s165
        %p167 = pneg %p39
        %p168 = pneg %p36
        %p169 = pneg %p60
        %p170 = pneg %p57
        %p171 = pneg %p81
        %p172 = pneg %p78
        %p173 = pneg %p107
        %p174 = pneg %p104
        %s175 = sand.u32 %s94, 1
        %s176 = scalar_lea.sflag [#allocation4], %s175
        %s177 = sand.u32 %s94, 1
        %s178 = smul.addr %s177, 32
        %s179 = scalar_lea.vmem [#allocation5], %s178
        %s180 = smul.u32 4, %s18
        %p181 = scmp.lt.s32.totalorder %s180, 7
        %s182 = scalar_select %p181, %s180, 7
        %s183 = smul.addr %s182, 8
        %s184 = scalar_lea.vmem %s0, %s183
        %s185 = smul.u32 4, %s18
        %s186 = smul.u32 4, %s18
        %v187 = vld [vmem:[%s184] sm:$0xff]
        %v188 = vld [vmem:[%s184 + $0x8] sm:$0xff]
        %v189 = vld [vmem:[%s184 + $0x10] sm:$0xff]
        %v190 = vld [vmem:[%s184 + $0x18] sm:$0xff]
        %v191 = vld [vmem:[#allocation2] sm:$0xff]
        %v192 = vld [vmem:[#allocation2 + $0x8] sm:$0xff]
        %v193 = vld [vmem:[#allocation2 + $0x10] sm:$0xff]
        %v194 = vld [vmem:[#allocation2 + $0x18] sm:$0xff]
        %v195 = vld [vmem:[#allocation2 + $0x20] sm:$0xff]
        %v196 = vld [vmem:[#allocation2 + $0x28] sm:$0xff]
        %v197 = vld [vmem:[#allocation2 + $0x30] sm:$0xff]
        %v198 = vld [vmem:[#allocation2 + $0x38] sm:$0xff]
        %v199 = vld [vmem:[#allocation2 + $0x40] sm:$0xff]
        %v200 = vld [vmem:[#allocation2 + $0x48] sm:$0xff]
        %v201 = vld [vmem:[#allocation2 + $0x50] sm:$0xff]
        %v202 = vld [vmem:[#allocation2 + $0x58] sm:$0xff]
        %v203 = vld [vmem:[#allocation2 + $0x60] sm:$0xff]
        %v204 = vld [vmem:[#allocation2 + $0x68] sm:$0xff]
        %v205 = vld [vmem:[#allocation2 + $0x70] sm:$0xff]
        %v206 = vld [vmem:[#allocation2 + $0x78] sm:$0xff]
        %v207 = vld [vmem:[#allocation2 + $0x80] sm:$0xff]
        %v208 = vld [vmem:[#allocation2 + $0x88] sm:$0xff]
        %v209 = vld [vmem:[#allocation2 + $0x90] sm:$0xff]
        %v210 = vld [vmem:[#allocation2 + $0x98] sm:$0xff]
        %v211 = vld [vmem:[#allocation2 + $0xa0] sm:$0xff]
        %v212 = vld [vmem:[#allocation2 + $0xa8] sm:$0xff]
        %v213 = vld [vmem:[#allocation2 + $0xb0] sm:$0xff]
        %v214 = vld [vmem:[#allocation2 + $0xb8] sm:$0xff]
        %v215 = vld [vmem:[#allocation2 + $0xc0] sm:$0xff]
        %v216 = vld [vmem:[#allocation2 + $0xc8] sm:$0xff]
        %v217 = vld [vmem:[#allocation2 + $0xd0] sm:$0xff]
        %v218 = vld [vmem:[#allocation2 + $0xd8] sm:$0xff]
        %v219 = vld [vmem:[#allocation2 + $0xe0] sm:$0xff]
        %v220 = vld [vmem:[#allocation2 + $0xe8] sm:$0xff]
        %v221 = vld [vmem:[#allocation2 + $0xf0] sm:$0xff]
        %v222 = vld [vmem:[#allocation2 + $0xf8] sm:$0xff]
        %v223 = vld [vmem:[#allocation2 + $0x100] sm:$0xff]
        %v224 = vld [vmem:[#allocation2 + $0x108] sm:$0xff]
        %v225 = vld [vmem:[#allocation2 + $0x110] sm:$0xff]
        %v226 = vld [vmem:[#allocation2 + $0x118] sm:$0xff]
        %v227 = vld [vmem:[#allocation2 + $0x120] sm:$0xff]
        %v228 = vld [vmem:[#allocation2 + $0x128] sm:$0xff]
        %v229 = vld [vmem:[#allocation2 + $0x130] sm:$0xff]
        %v230 = vld [vmem:[#allocation2 + $0x138] sm:$0xff]
        %v231 = vld [vmem:[#allocation2 + $0x140] sm:$0xff]
        %v232 = vld [vmem:[#allocation2 + $0x148] sm:$0xff]
        %v233 = vld [vmem:[#allocation2 + $0x150] sm:$0xff]
        %v234 = vld [vmem:[#allocation2 + $0x158] sm:$0xff]
        %v235 = vld [vmem:[#allocation2 + $0x160] sm:$0xff]
        %v236 = vld [vmem:[#allocation2 + $0x168] sm:$0xff]
        %v237 = vld [vmem:[#allocation2 + $0x170] sm:$0xff]
        %v238 = vld [vmem:[#allocation2 + $0x178] sm:$0xff]
        %v239 = vld [vmem:[%s2] sm:$0x1]
        %v240 = vld [vmem:[%s2 + $0x1] sm:$0x1]
        %v241 = vld [vmem:[%s2 + $0x2] sm:$0x1]
        %v243 = vlaneseq
        %v244 = vshrl.u32 %v243, 7
        %v245 = vsub.s32 0, %v244
        %v246 = vrot.slane %v239, %v245
        %248 = vmatprep.subr.mxu0 0.0
        %249 = vmatpush1.msra.mxu0 %v191
        %250 = vmatprep.subr.mxu0 0.0
        %251 = vmatpush1.msra.mxu0 %v192
        %252 = vmatprep.subr.mxu0 0.0
        %253 = vmatpush1.msra.mxu0 %v193
        %254 = vmatprep.subr.mxu0 0.0
        %255 = vmatpush1.msra.mxu0 %v194
        %256 = vmatprep.subr.mxu0 0.0
        %257 = vmatpush1.msra.mxu0 %v195
        %258 = vmatprep.subr.mxu0 0.0
        %259 = vmatpush1.msra.mxu0 %v196
        %260 = vmatprep.subr.mxu0 0.0
        %261 = vmatpush1.msra.mxu0 %v197
        %262 = vmatprep.subr.mxu0 0.0
        %263 = vmatpush1.msra.mxu0 %v198
        %264 = vmatprep.subr.mxu0 0.0
        %265 = vmatpush1.msra.mxu0 %v199
        %266 = vmatprep.subr.mxu0 0.0
        %267 = vmatpush1.msra.mxu0 %v200
        %268 = vmatprep.subr.mxu0 0.0
        %269 = vmatpush1.msra.mxu0 %v201
        %270 = vmatprep.subr.mxu0 0.0
        %271 = vmatpush1.msra.mxu0 %v202
        %272 = vmatprep.subr.mxu0 0.0
        %273 = vmatpush1.msra.mxu0 %v203
        %274 = vmatprep.subr.mxu0 0.0
        %275 = vmatpush1.msra.mxu0 %v204
        %276 = vmatprep.subr.mxu0 0.0
        %277 = vmatpush1.msra.mxu0 %v205
        %278 = vmatprep.subr.mxu0 0.0
        %279 = vmatpush1.msra.mxu0 %v206
        %280 = vmatprep.subr.mxu0 0.0
        %281 = vmatpush1.msra.mxu0 0.0
        %282 = vmatprep.subr.mxu0 0.0
        %283 = vmatpush1.msra.mxu0 0.0
        %284 = vmatprep.subr.mxu0 0.0
        %285 = vmatpush1.msra.mxu0 0.0
        %286 = vmatprep.subr.mxu0 0.0
        %287 = vmatpush1.msra.mxu0 0.0
        %288 = vmatprep.subr.mxu0 0.0
        %289 = vmatpush1.msra.mxu0 0.0
        %290 = vmatprep.subr.mxu0 0.0
        %291 = vmatpush1.msra.mxu0 0.0
        %292 = vmatprep.subr.mxu0 0.0
        %293 = vmatpush1.msra.mxu0 0.0
        %294 = vmatprep.subr.mxu0 0.0
        %295 = vmatpush1.msra.mxu0 0.0
        %296 = vmatprep.subr.mxu0 0.0
        %297 = vmatpush1.msra.mxu0 0.0
        %298 = vmatprep.subr.mxu0 0.0
        %299 = vmatpush1.msra.mxu0 0.0
        %300 = vmatprep.subr.mxu0 0.0
        %301 = vmatpush1.msra.mxu0 0.0
        %302 = vmatprep.subr.mxu0 0.0
        %303 = vmatpush1.msra.mxu0 0.0
        %304 = vmatprep.subr.mxu0 0.0
        %305 = vmatpush1.msra.mxu0 0.0
        %306 = vmatprep.subr.mxu0 0.0
        %307 = vmatpush1.msra.mxu0 0.0
        %308 = vmatprep.subr.mxu0 0.0
        %309 = vmatpush1.msra.mxu0 0.0
        %310 = vmatprep.subr.mxu0 0.0
        %311 = vmatpush1.msra.mxu0 0.0
        %312 = vmatprep.mubr.f32.mxu0 0.0
        %313 = vmatmul.mubr.f32.gmra.mrb[0].mxu0 %v187
        %v314 = vpop.f32.mrb[0].mxu0
        %v315 = vadd.f32 %v246, %v314
        %v316 = vpop.f32.mrb[0].mxu0
        %317 = vmatprep.mubr.f32.mxu0 0.0
        %318 = vmatmul.mubr.f32.gmra.mrb[0].mxu0 %v188
        %v319 = vpop.f32.mrb[0].mxu0
        %v320 = vadd.f32 %v246, %v319
        %v321 = vpop.f32.mrb[0].mxu0
        %322 = vmatprep.mubr.f32.mxu0 0.0
        %323 = vmatmul.mubr.f32.gmra.mrb[0].mxu0 %v189
        %v324 = vpop.f32.mrb[0].mxu0
        %v325 = vadd.f32 %v246, %v324
        %v326 = vpop.f32.mrb[0].mxu0
        %327 = vmatprep.mubr.f32.mxu0 0.0
        %328 = vmatmul.mubr.f32.gmra.mrb[0].mxu0 %v190
        %v329 = vpop.f32.mrb[0].mxu0
        %v330 = vadd.f32 %v246, %v329
        %v331 = vpop.f32.mrb[0].mxu0
        %332 = vdwg.mxu0
        %v333 = vmax.f32 %v315, 0.0
        %v334 = vmax.f32 %v320, 0.0
        %v335 = vmax.f32 %v325, 0.0
        %v336 = vmax.f32 %v330, 0.0
        %v338 = vlaneseq
        %v339 = vshrl.u32 %v338, 7
        %v340 = vsub.s32 0, %v339
        %v341 = vrot.slane %v240, %v340
        %343 = vmatprep.subr.mxu0 0.0
        %344 = vmatpush1.msra.mxu0 %v207
        %345 = vmatprep.subr.mxu0 0.0
        %346 = vmatpush1.msra.mxu0 %v208
        %347 = vmatprep.subr.mxu0 0.0
        %348 = vmatpush1.msra.mxu0 %v209
        %349 = vmatprep.subr.mxu0 0.0
        %350 = vmatpush1.msra.mxu0 %v210
        %351 = vmatprep.subr.mxu0 0.0
        %352 = vmatpush1.msra.mxu0 %v211
        %353 = vmatprep.subr.mxu0 0.0
        %354 = vmatpush1.msra.mxu0 %v212
        %355 = vmatprep.subr.mxu0 0.0
        %356 = vmatpush1.msra.mxu0 %v213
        %357 = vmatprep.subr.mxu0 0.0
        %358 = vmatpush1.msra.mxu0 %v214
        %359 = vmatprep.subr.mxu0 0.0
        %360 = vmatpush1.msra.mxu0 %v215
        %361 = vmatprep.subr.mxu0 0.0
        %362 = vmatpush1.msra.mxu0 %v216
        %363 = vmatprep.subr.mxu0 0.0
        %364 = vmatpush1.msra.mxu0 %v217
        %365 = vmatprep.subr.mxu0 0.0
        %366 = vmatpush1.msra.mxu0 %v218
        %367 = vmatprep.subr.mxu0 0.0
        %368 = vmatpush1.msra.mxu0 %v219
        %369 = vmatprep.subr.mxu0 0.0
        %370 = vmatpush1.msra.mxu0 %v220
        %371 = vmatprep.subr.mxu0 0.0
        %372 = vmatpush1.msra.mxu0 %v221
        %373 = vmatprep.subr.mxu0 0.0
        %374 = vmatpush1.msra.mxu0 %v222
        %375 = vmatprep.subr.mxu0 0.0
        %376 = vmatpush1.msra.mxu0 0.0
        %377 = vmatprep.subr.mxu0 0.0
        %378 = vmatpush1.msra.mxu0 0.0
        %379 = vmatprep.subr.mxu0 0.0
        %380 = vmatpush1.msra.mxu0 0.0
        %381 = vmatprep.subr.mxu0 0.0
        %382 = vmatpush1.msra.mxu0 0.0
        %383 = vmatprep.subr.mxu0 0.0
        %384 = vmatpush1.msra.mxu0 0.0
        %385 = vmatprep.subr.mxu0 0.0
        %386 = vmatpush1.msra.mxu0 0.0
        %387 = vmatprep.subr.mxu0 0.0
        %388 = vmatpush1.msra.mxu0 0.0
        %389 = vmatprep.subr.mxu0 0.0
        %390 = vmatpush1.msra.mxu0 0.0
        %391 = vmatprep.subr.mxu0 0.0
        %392 = vmatpush1.msra.mxu0 0.0
        %393 = vmatprep.subr.mxu0 0.0
        %394 = vmatpush1.msra.mxu0 0.0
        %395 = vmatprep.subr.mxu0 0.0
        %396 = vmatpush1.msra.mxu0 0.0
        %397 = vmatprep.subr.mxu0 0.0
        %398 = vmatpush1.msra.mxu0 0.0
        %399 = vmatprep.subr.mxu0 0.0
        %400 = vmatpush1.msra.mxu0 0.0
        %401 = vmatprep.subr.mxu0 0.0
        %402 = vmatpush1.msra.mxu0 0.0
        %403 = vmatprep.subr.mxu0 0.0
        %404 = vmatpush1.msra.mxu0 0.0
        %405 = vmatprep.subr.mxu0 0.0
        %406 = vmatpush1.msra.mxu0 0.0
        %407 = vmatprep.mubr.f32.mxu0 0.0
        %408 = vmatmul.mubr.f32.gmra.mrb[0].mxu0 %v333
        %v409 = vpop.f32.mrb[0].mxu0
        %v410 = vadd.f32 %v341, %v409
        %v411 = vpop.f32.mrb[0].mxu0
        %412 = vmatprep.mubr.f32.mxu0 0.0
        %413 = vmatmul.mubr.f32.gmra.mrb[0].mxu0 %v334
        %v414 = vpop.f32.mrb[0].mxu0
        %v415 = vadd.f32 %v341, %v414
        %v416 = vpop.f32.mrb[0].mxu0
        %417 = vmatprep.mubr.f32.mxu0 0.0
        %418 = vmatmul.mubr.f32.gmra.mrb[0].mxu0 %v335
        %v419 = vpop.f32.mrb[0].mxu0
        %v420 = vadd.f32 %v341, %v419
        %v421 = vpop.f32.mrb[0].mxu0
        %422 = vmatprep.mubr.f32.mxu0 0.0
        %423 = vmatmul.mubr.f32.gmra.mrb[0].mxu0 %v336
        %v424 = vpop.f32.mrb[0].mxu0
        %v425 = vadd.f32 %v341, %v424
        %v426 = vpop.f32.mrb[0].mxu0
        %427 = vdwg.mxu0
        %v428 = vmax.f32 %v410, 0.0
        %v429 = vmax.f32 %v415, 0.0
        %v430 = vmax.f32 %v420, 0.0
        %v431 = vmax.f32 %v425, 0.0
        %v433 = vlaneseq
        %v434 = vshrl.u32 %v433, 7
        %v435 = vsub.s32 0, %v434
        %v436 = vrot.slane %v241, %v435
        %438 = vmatprep.subr.mxu0 0.0
        %439 = vmatpush1.msra.mxu0 %v223
        %440 = vmatprep.subr.mxu0 0.0
        %441 = vmatpush1.msra.mxu0 %v224
        %442 = vmatprep.subr.mxu0 0.0
        %443 = vmatpush1.msra.mxu0 %v225
        %444 = vmatprep.subr.mxu0 0.0
        %445 = vmatpush1.msra.mxu0 %v226
        %446 = vmatprep.subr.mxu0 0.0
        %447 = vmatpush1.msra.mxu0 %v227
        %448 = vmatprep.subr.mxu0 0.0
        %449 = vmatpush1.msra.mxu0 %v228
        %450 = vmatprep.subr.mxu0 0.0
        %451 = vmatpush1.msra.mxu0 %v229
        %452 = vmatprep.subr.mxu0 0.0
        %453 = vmatpush1.msra.mxu0 %v230
        %454 = vmatprep.subr.mxu0 0.0
        %455 = vmatpush1.msra.mxu0 %v231
        %456 = vmatprep.subr.mxu0 0.0
        %457 = vmatpush1.msra.mxu0 %v232
        %458 = vmatprep.subr.mxu0 0.0
        %459 = vmatpush1.msra.mxu0 %v233
        %460 = vmatprep.subr.mxu0 0.0
        %461 = vmatpush1.msra.mxu0 %v234
        %462 = vmatprep.subr.mxu0 0.0
        %463 = vmatpush1.msra.mxu0 %v235
        %464 = vmatprep.subr.mxu0 0.0
        %465 = vmatpush1.msra.mxu0 %v236
        %466 = vmatprep.subr.mxu0 0.0
        %467 = vmatpush1.msra.mxu0 %v237
        %468 = vmatprep.subr.mxu0 0.0
        %469 = vmatpush1.msra.mxu0 %v238
        %470 = vmatprep.subr.mxu0 0.0
        %471 = vmatpush1.msra.mxu0 0.0
        %472 = vmatprep.subr.mxu0 0.0
        %473 = vmatpush1.msra.mxu0 0.0
        %474 = vmatprep.subr.mxu0 0.0
        %475 = vmatpush1.msra.mxu0 0.0
        %476 = vmatprep.subr.mxu0 0.0
        %477 = vmatpush1.msra.mxu0 0.0
        %478 = vmatprep.subr.mxu0 0.0
        %479 = vmatpush1.msra.mxu0 0.0
        %480 = vmatprep.subr.mxu0 0.0
        %481 = vmatpush1.msra.mxu0 0.0
        %482 = vmatprep.subr.mxu0 0.0
        %483 = vmatpush1.msra.mxu0 0.0
        %484 = vmatprep.subr.mxu0 0.0
        %485 = vmatpush1.msra.mxu0 0.0
        %486 = vmatprep.subr.mxu0 0.0
        %487 = vmatpush1.msra.mxu0 0.0
        %488 = vmatprep.subr.mxu0 0.0
        %489 = vmatpush1.msra.mxu0 0.0
        %490 = vmatprep.subr.mxu0 0.0
        %491 = vmatpush1.msra.mxu0 0.0
        %492 = vmatprep.subr.mxu0 0.0
        %493 = vmatpush1.msra.mxu0 0.0
        %494 = vmatprep.subr.mxu0 0.0
        %495 = vmatpush1.msra.mxu0 0.0
        %496 = vmatprep.subr.mxu0 0.0
        %497 = vmatpush1.msra.mxu0 0.0
        %498 = vmatprep.subr.mxu0 0.0
        %499 = vmatpush1.msra.mxu0 0.0
        %500 = vmatprep.subr.mxu0 0.0
        %501 = vmatpush1.msra.mxu0 0.0
        %502 = vmatprep.mubr.f32.mxu0 0.0
        %503 = vmatmul.mubr.f32.gmra.mrb[0].mxu0 %v428
        %v504 = vpop.f32.mrb[0].mxu0
        %v505 = vadd.f32 %v436, %v504
        %v506 = vpop.f32.mrb[0].mxu0
        %507 = vmatprep.mubr.f32.mxu0 0.0
        %508 = vmatmul.mubr.f32.gmra.mrb[0].mxu0 %v429
        %v509 = vpop.f32.mrb[0].mxu0
        %v510 = vadd.f32 %v436, %v509
        %v511 = vpop.f32.mrb[0].mxu0
        %512 = vmatprep.mubr.f32.mxu0 0.0
        %513 = vmatmul.mubr.f32.gmra.mrb[0].mxu0 %v430
        %v514 = vpop.f32.mrb[0].mxu0
        %v515 = vadd.f32 %v436, %v514
        %v516 = vpop.f32.mrb[0].mxu0
        %517 = vmatprep.mubr.f32.mxu0 0.0
        %518 = vmatmul.mubr.f32.gmra.mrb[0].mxu0 %v431
        %v519 = vpop.f32.mrb[0].mxu0
        %v520 = vadd.f32 %v436, %v519
        %v521 = vpop.f32.mrb[0].mxu0
        %522 = vdwg.mxu0
        %523 = vst [vmem:[%s179] sm:$0xff] %v505
        %524 = vst [vmem:[%s179 + $0x8] sm:$0xff] %v510
        %525 = vst [vmem:[%s179 + $0x10] sm:$0xff] %v515
        %526 = vst [vmem:[%s179 + $0x18] sm:$0xff] %v520
        %s527 = sand.u32 %s94, 1
        %s528 = scalar_lea.sflag [#allocation4], %s527
        %s529 = sand.u32 %s94, 1
        %s530 = smul.addr %s529, 32
        %s531 = scalar_lea.vmem [#allocation5], %s530
        // Predicated region
        $region37: #{unit_module_forward.1} parent=31 // pred_check
          %p532 = pneg %p104
        $region38: #{unit_module_forward.1} parent=31 // pred_check_branch
          %534 = sbr.rel (%p532) target = $region40
        $region39: #{unit_module_forward.1} parent=31 // pred_region
          %s535 = smul.u32 4, %s18
          %s537 = ssub.s32 512, 512
          %538 = vsyncadd %s528, %s537
          %s539 = smul.addr %s535, 128
          %s540 = scalar_lea.hbm %s3, %s539
          %s541 = sshll.u32 %s531, 4
          %s542 = int_to_ptr.vmem [resolvable:$true] %s541
          %547 = dma.vmem_to_hbm [thread:$0]  %s542, 512, %s540, %s528, 128, 128, 8
        $region40: #{unit_module_forward.1} parent=31 // pred_fallthru
          _
      $region32: #{unit_module_forward.1} parent=5 // pred_fallthru
        _
      %p548 = scmp.le.s32.totalorder 2, %s13
      // Predicated region
      $region41: #{unit_module_forward.1} parent=5 // pred_check
        %p549 = pneg %p548
      $region42: #{unit_module_forward.1} parent=5 // pred_check_branch
        %551 = sbr.rel (%p549) target = $region44
      $region43: #{unit_module_forward.1} parent=5 // pred_region
        %s552 = ssub.s32 %s13, 2
        // Predicated region
        $region45: #{unit_module_forward.1} parent=43 // pred_check
          %p553 = pneg %p110
        $region46: #{unit_module_forward.1} parent=43 // pred_check_branch
          %555 = sbr.rel (%p553) target = $region48
        $region47: #{unit_module_forward.1} parent=43 // pred_region
          %s556 = sand.u32 %s95, 1
          %s557 = scalar_lea.sflag [#allocation4], %s556
          %s558 = sand.u32 %s95, 1
          %s559 = smul.addr %s558, 32
          %s560 = scalar_lea.vmem [#allocation5], %s559
          %561 = dma.done %s557, 512
        $region48: #{unit_module_forward.1} parent=43 // pred_fallthru
          _
      $region44: #{unit_module_forward.1} parent=5 // pred_fallthru
        _
    $region6: #{unit_module_forward.1} parent=1 // loop_footer
      %s17 = sadd.s32 1, %s13
    $region7: #{unit_module_forward.1} parent=1 // loop_footer_branch
      %12 = sbr.rel target = $region3
    $region8: #{unit_module_forward.1} parent=1 // loop_exit
      _
    %562 = vsyncpa [#allocation3], 1
    %s563 = scalar_lea.sflag [#allocation3], 1
    %564 = vsyncpa %s563, 1
    %565 = vsyncpa [#allocation4], 1
    %s566 = scalar_lea.sflag [#allocation4], 1
    %567 = vsyncpa %s566, 1

</llo_original>
